<compile_context>
chip_gen: v6e
topology: v6e:2x2x1
jax: 0.10.0
libtpu: 0.0.40
codegen_flags: <defaults>
</compile_context>

<pallas_src>
import functools

import jax
import jax.numpy as jnp
from jax import lax
from jax.experimental import pallas as pl
from jax.experimental.pallas import tpu as pltpu


def _ce2d_kernel(x_ref, t_ref, w_ref,                 # inputs
                 loss_ref, wsum_ref,                  # per-(batch,split) partials
                 acc_loss, acc_w,                     # VMEM scratch accumulators
                 *, n_classes, rows_total, tile_rows, blocks_per_split,
                 ignore_label, needs_row_mask):
    j = pl.program_id(2)

    # Reset the accumulators at the start of each (batch, split) row range.
    @pl.when(j == 0)
    def _():
        acc_loss[...] = jnp.zeros_like(acc_loss)
        acc_w[...] = jnp.zeros_like(acc_w)

    t = t_ref[0]                                      # (TR, 128) int32
    valid = jnp.logical_and(t >= 0, t != ignore_label)
    if needs_row_mask:                                # static: ragged tails only
        row = lax.broadcasted_iota(jnp.int32, (tile_rows, 128), 0)
        blk = pl.program_id(1) * blocks_per_split + j
        valid = jnp.logical_and(valid, blk * tile_rows + row < rows_total)

    # Stable log-sum-exp over classes, unrolled over the (small) class axis.
    m = x_ref[0, 0].astype(jnp.float32)               # (TR, 128)
    for k in range(1, n_classes):
        m = jnp.maximum(m, x_ref[0, k].astype(jnp.float32))

    sumexp = jnp.zeros((tile_rows, 128), jnp.float32)
    logit_t = jnp.zeros((tile_rows, 128), jnp.float32)
    w_t = jnp.zeros((tile_rows, 128), jnp.float32)
    for k in range(n_classes):
        xk = x_ref[0, k].astype(jnp.float32)
        sumexp = sumexp + jnp.exp(xk - m)
        hit = t == k
        logit_t = jnp.where(hit, xk, logit_t)
        w_t = jnp.where(hit, w_ref[k], w_t)           # (128,) lane row -> splat

    nll = (m - logit_t) + jnp.log(sumexp)             # (TR, 128)

    # Dense element-wise accumulation; any NaN/garbage from OOB tail reads is
    # removed by the select (never multiplied into the accumulator).
    acc_loss[...] += jnp.where(valid, w_t * nll, 0.0)
    acc_w[...] += jnp.where(valid, w_t, 0.0)

    # Epilogue: one sublane reduce per (batch, split); lane-dense 128-wide
    # partial sums go to HBM, the wrapper finishes the scalar reduction.
    @pl.when(j == pl.num_programs(2) - 1)
    def _():
        loss_ref[...] = jnp.sum(acc_loss[...], axis=0,
                                keepdims=True).reshape(1, 1, 1, 128)
        wsum_ref[...] = jnp.sum(acc_w[...], axis=0,
                                keepdims=True).reshape(1, 1, 1, 128)


def _vmem_plan():
    """(tile byte budget, vmem_limit_bytes) - generation aware, safe fallback."""
    try:
        cap = int(getattr(pltpu.get_tpu_info(), "vmem_capacity_bytes", 0))
    except Exception:
        cap = 0
    if cap >= (100 << 20):          # v5e / v6e: 128 MiB physical VMEM
        return 40 << 20, 80 << 20
    # v7x (64 MiB physical) or unknown: stay inside the 32 MiB scoped default.
    return 14 << 20, 32 << 20


def _pick_tile_rows(rows, c, itemsize, budget_bytes, max_rows):
    """Rows of 128 pixels per tile, from a VMEM budget with correct padding.

    Accounts for double-buffered logits + int32 targets, the two f32
    accumulators, and ~12 (rows, 128) f32 in-kernel temporaries.
    """
    per_row = 128 * (2 * c * itemsize + 2 * 4 + 2 * 4 + 12 * 4)
    tr = budget_bytes // per_row
    tr = min(tr, max_rows)
    tr = max(8, (tr // 8) * 8)      # (8, 128) tiling rule
    if rows <= tr:
        return rows                 # one full block along the row axis
    return int(tr)


def cross_entropy_2d(predict, target, weight=None, size_average=True,
                     ignore_label=255, max_tile_rows=1024):
    """predict: (n, c, h, w) float; target: (n, h, w) int. Returns scalar loss."""
    n, c, h, w = predict.shape
    assert target.shape == (n, h, w)
    hw = h * w
    hw_pad = -(-hw // 128) * 128

    logits = predict.reshape(n, c, hw)                # free reshape, no transpose
    tgt = target.reshape(n, hw).astype(jnp.int32)
    if hw_pad != hw:
        # Unaligned spatial size: pad once so pixels fold into dense
        # (rows, 128) tiles; padded pixels carry ignore_label -> masked.
        logits = jnp.pad(logits, ((0, 0), (0, 0), (0, hw_pad - hw)))
        tgt = jnp.pad(tgt, ((0, 0), (0, hw_pad - hw)),
                      constant_values=ignore_label)
    rows = hw_pad // 128
    logits = logits.reshape(n, c, rows, 128)
    tgt = tgt.reshape(n, rows, 128)

    if weight is None:
        weight = jnp.ones((c,), jnp.float32)
    weight = jnp.asarray(weight, jnp.float32).reshape(c)
    # Lane-replicated weight rows: per-target class weight is gathered with c
    # selects in the kernel instead of a (C, pixels) one-hot weight tensor.
    w_rows = jnp.broadcast_to(weight[:, None], (c, 128))

    budget, vmem_limit = _vmem_plan()
    tr = _pick_tile_rows(rows, c, jnp.dtype(logits.dtype).itemsize, budget,
                         max_tile_rows)
    rb = -(-rows // tr)                               # total row blocks
    if rb < 2 and rows >= 16:
        # Ensure >= 2 row blocks so the split axis can feed both v7x
        # TensorCores even when the whole row range fits in one tile.
        tr = max(8, ((-(-rows // 2) + 7) // 8) * 8)
        rb = -(-rows // tr)
    n_split = 2 if rb >= 2 else 1                     # v7x megacore split
    bph = -(-rb // n_split)                           # row blocks per split
    needs_row_mask = (n_split * bph * tr) != rows

    if n_split * bph == rb:
        def row_block(s_, j_):
            return s_ * bph + j_
    else:
        # Odd block count: the last logical block of split 1 is clamped onto a
        # real block and fully removed by the row-bounds mask.
        def row_block(s_, j_):
            return jnp.minimum(s_ * bph + j_, rb - 1)

    kernel = functools.partial(
        _ce2d_kernel, n_classes=c, rows_total=rows, tile_rows=tr,
        blocks_per_split=bph, ignore_label=ignore_label,
        needs_row_mask=needs_row_mask)

    loss_parts, w_parts = pl.pallas_call(
        kernel,
        out_shape=(
            jax.ShapeDtypeStruct((n, n_split, 1, 128), jnp.float32),
            jax.ShapeDtypeStruct((n, n_split, 1, 128), jnp.float32),
        ),
        grid_spec=pltpu.PrefetchScalarGridSpec(
            num_scalar_prefetch=0,
            grid=(n, n_split, bph),
            in_specs=[
                pl.BlockSpec((1, c, tr, 128),
                             lambda b, s, j: (b, 0, row_block(s, j), 0)),
                pl.BlockSpec((1, tr, 128),
                             lambda b, s, j: (b, row_block(s, j), 0)),
                pl.BlockSpec((c, 128), lambda b, s, j: (0, 0)),
            ],
            out_specs=(
                pl.BlockSpec((1, 1, 1, 128), lambda b, s, j: (b, s, 0, 0)),
                pl.BlockSpec((1, 1, 1, 128), lambda b, s, j: (b, s, 0, 0)),
            ),
            scratch_shapes=[
                pltpu.VMEM((tr, 128), jnp.float32),
                pltpu.VMEM((tr, 128), jnp.float32),
            ],
        ),
        compiler_params=pltpu.CompilerParams(
            dimension_semantics=("parallel", "parallel", "arbitrary"),
            vmem_limit_bytes=vmem_limit,
        ),
    )(logits, tgt, w_rows)

    loss_sum = jnp.sum(loss_parts)
    weight_sum = jnp.sum(w_parts)
    # NOTE: if every pixel is ignored, weight_sum == 0 and size_average gives
    # NaN, matching F.cross_entropy over an empty selection.  Valid targets
    # with value >= c contribute zero loss and zero weight (PyTorch would
    # raise); documented, not checked.
    if size_average:
        return loss_sum / weight_sum
    return loss_sum


def _reference(predict, target, weight=None, size_average=True,
               ignore_label=255):
    """Pure-JAX reference mirroring the PyTorch module."""
    n, c, h, w = predict.shape
    logits = jnp.transpose(predict, (0, 2, 3, 1)).reshape(-1, c).astype(jnp.float32)
    tgt = target.reshape(-1).astype(jnp.int32)
    valid = jnp.logical_and(tgt >= 0, tgt != ignore_label)
    t_safe = jnp.where(valid, tgt, 0)
    logp = jax.nn.log_softmax(logits, axis=-1)
    nll = -jnp.take_along_axis(logp, t_safe[:, None], axis=-1)[:, 0]
    if weight is None:
        wt = jnp.ones((c,), jnp.float32)
    else:
        wt = jnp.asarray(weight, jnp.float32)
    w_t = wt[t_safe]
    num = jnp.sum(jnp.where(valid, w_t * nll, 0.0))
    den = jnp.sum(jnp.where(valid, w_t, 0.0))
    return num / den if size_average else num


if __name__ == "__main__":
    key = jax.random.PRNGKey(0)
    k1, k2, k3, k4, k5, k6 = jax.random.split(key, 6)

    # Test 1: unweighted mean loss, hw multiple of 128, single row block.
    n, c, h, w = 2, 4, 16, 16
    predict = jax.random.normal(k1, (n, c, h, w), dtype=jnp.float32)
    target = jax.random.randint(k2, (n, h, w), 0, c, dtype=jnp.int32)
    target = target.at[0, 0, :4].set(255)   # ignore_label pixels
    target = target.at[1, 1, :3].set(-1)    # negative pixels
    loss = jax.block_until_ready(cross_entropy_2d(predict, target))
    ref = _reference(predict, target)
    assert jnp.allclose(loss, ref, atol=1e-5, rtol=1e-5), (loss, ref)

    # Test 2: class weights + forced multi-block accumulation + row-range
    # split (odd block count exercises the clamped, fully-masked duplicate
    # block and the ragged row tail).
    cls_w = jnp.array([0.5, 1.0, 2.0, 1.5], dtype=jnp.float32)
    h2 = w2 = 48                            # hw = 2304 -> 18 rows of 128 pixels
    predict2 = jax.random.normal(k3, (n, c, h2, w2), dtype=jnp.float32)
    target2 = jax.random.randint(k4, (n, h2, w2), 0, c, dtype=jnp.int32)
    target2 = target2.at[0, 5, :7].set(255)
    loss2 = jax.block_until_ready(
        cross_entropy_2d(predict2, target2, weight=cls_w, max_tile_rows=8))
    ref2 = _reference(predict2, target2, weight=cls_w)
    assert jnp.allclose(loss2, ref2, atol=1e-5, rtol=1e-5), (loss2, ref2)

    # Test 3: spatial size not a multiple of 128 (padded path) and
    # size_average=False (summed loss).
    h3 = w3 = 17
    predict3 = jax.random.normal(k5, (n, c, h3, w3), dtype=jnp.float32)
    target3 = jax.random.randint(k6, (n, h3, w3), 0, c, dtype=jnp.int32)
    target3 = target3.at[0, 2, :5].set(255)
    loss3 = jax.block_until_ready(
        cross_entropy_2d(predict3, target3, weight=cls_w, size_average=False))
    ref3 = _reference(predict3, target3, weight=cls_w, size_average=False)
    assert jnp.allclose(loss3, ref3, atol=1e-4, rtol=1e-5), (loss3, ref3)

    print("KERNEL_OK")
</pallas_src>

<mosaic_0001>
module attributes {stable_mosaic.version = 11 : i64} {
  func.func @_ce2d_kernel(%arg0: i32, %arg1: i32, %arg2: i32, %arg3: memref<1x4x2x128xf32, #tpu.memory_space<vmem>>, %arg4: memref<1x2x128xi32, #tpu.memory_space<vmem>>, %arg5: memref<4x128xf32, #tpu.memory_space<vmem>>, %arg6: memref<1x1x1x128xf32, #tpu.memory_space<vmem>>, %arg7: memref<1x1x1x128xf32, #tpu.memory_space<vmem>>, %arg8: memref<2x128xf32, #tpu.memory_space<vmem>>, %arg9: memref<2x128xf32, #tpu.memory_space<vmem>>) attributes {dimension_semantics = [#tpu.dimension_semantics<parallel>, #tpu.dimension_semantics<parallel>, #tpu.dimension_semantics<arbitrary>], iteration_bounds = array<i64: 2, 1, 1>, scalar_prefetch = 0 : i64, scratch_operands = 2 : i64, tpu.core_type = #tpu.core_type<tc>, window_params = [{transform_indices = @transform_0, window_bounds = array<i64: 1, 4, 2, 128>}, {transform_indices = @transform_1, window_bounds = array<i64: 1, 2, 128>}, {pipeline_mode = #tpu.pipeline_mode<synchronous>, transform_indices = @transform_2, window_bounds = array<i64: 4, 128>}, {transform_indices = @transform_3, window_bounds = array<i64: 1, 1, 1, 128>}, {transform_indices = @transform_4, window_bounds = array<i64: 1, 1, 1, 128>}]} {
    %c0_i32 = arith.constant 0 : i32
    %0 = arith.cmpi eq, %arg2, %c0_i32 : i32
    %1 = arith.extui %0 : i1 to i32
    %c0_i32_0 = arith.constant 0 : i32
    %2 = arith.cmpi ne, %1, %c0_i32_0 : i32
    scf.if %2 {
      %cst_56 = arith.constant 0.000000e+00 : f32
      %93 = vector.broadcast %cst_56 : f32 to vector<2x128xf32>
      %c0_57 = arith.constant 0 : index
      %c0_58 = arith.constant 0 : index
      %94 = vector.load %arg8[%c0_57, %c0_58] : memref<2x128xf32, #tpu.memory_space<vmem>>, vector<2x128xf32>
      tpu.vector_store %arg8[%c0_57, %c0_58], %93 {strides = array<i32>} : memref<2x128xf32, #tpu.memory_space<vmem>>, vector<2x128xf32>,
      %cst_59 = arith.constant 0.000000e+00 : f32
      %95 = vector.broadcast %cst_59 : f32 to vector<2x128xf32>
      %c0_60 = arith.constant 0 : index
      %c0_61 = arith.constant 0 : index
      %96 = vector.load %arg9[%c0_60, %c0_61] : memref<2x128xf32, #tpu.memory_space<vmem>>, vector<2x128xf32>
      tpu.vector_store %arg9[%c0_60, %c0_61], %95 {strides = array<i32>} : memref<2x128xf32, #tpu.memory_space<vmem>>, vector<2x128xf32>,
    } else {
    }
    %c0 = arith.constant 0 : index
    %c0_1 = arith.constant 0 : index
    %c0_2 = arith.constant 0 : index
    %3 = vector.load %arg4[%c0, %c0_1, %c0_2] : memref<1x2x128xi32, #tpu.memory_space<vmem>>, vector<1x2x128xi32>
    %4 = vector.shape_cast %3 : vector<1x2x128xi32> to vector<2x128xi32>
    %c0_i32_3 = arith.constant 0 : i32
    %5 = vector.broadcast %c0_i32_3 : i32 to vector<2x128xi32>
    %6 = arith.cmpi sge, %4, %5 : vector<2x128xi32>
    %c255_i32 = arith.constant 255 : i32
    %7 = vector.broadcast %c255_i32 : i32 to vector<2x128xi32>
    %8 = arith.cmpi ne, %4, %7 : vector<2x128xi32>
    %9 = arith.andi %6, %8 : vector<2x128xi1>
    %c0_4 = arith.constant 0 : index
    %c0_5 = arith.constant 0 : index
    %c0_6 = arith.constant 0 : index
    %c0_7 = arith.constant 0 : index
    %10 = vector.load %arg3[%c0_4, %c0_5, %c0_6, %c0_7] : memref<1x4x2x128xf32, #tpu.memory_space<vmem>>, vector<1x1x2x128xf32>
    %11 = vector.shape_cast %10 : vector<1x1x2x128xf32> to vector<2x128xf32>
    %c0_8 = arith.constant 0 : index
    %c1 = arith.constant 1 : index
    %c0_9 = arith.constant 0 : index
    %c0_10 = arith.constant 0 : index
    %12 = vector.load %arg3[%c0_8, %c1, %c0_9, %c0_10] : memref<1x4x2x128xf32, #tpu.memory_space<vmem>>, vector<1x1x2x128xf32>
    %13 = vector.shape_cast %12 : vector<1x1x2x128xf32> to vector<2x128xf32>
    %14 = arith.maximumf %11, %13 : vector<2x128xf32>
    %c0_11 = arith.constant 0 : index
    %c2 = arith.constant 2 : index
    %c0_12 = arith.constant 0 : index
    %c0_13 = arith.constant 0 : index
    %15 = vector.load %arg3[%c0_11, %c2, %c0_12, %c0_13] : memref<1x4x2x128xf32, #tpu.memory_space<vmem>>, vector<1x1x2x128xf32>
    %16 = vector.shape_cast %15 : vector<1x1x2x128xf32> to vector<2x128xf32>
    %17 = arith.maximumf %14, %16 : vector<2x128xf32>
    %c0_14 = arith.constant 0 : index
    %c3 = arith.constant 3 : index
    %c0_15 = arith.constant 0 : index
    %c0_16 = arith.constant 0 : index
    %18 = vector.load %arg3[%c0_14, %c3, %c0_15, %c0_16] : memref<1x4x2x128xf32, #tpu.memory_space<vmem>>, vector<1x1x2x128xf32>
    %19 = vector.shape_cast %18 : vector<1x1x2x128xf32> to vector<2x128xf32>
    %20 = arith.maximumf %17, %19 : vector<2x128xf32>
    %cst = arith.constant 0.000000e+00 : f32
    %21 = vector.broadcast %cst : f32 to vector<2x128xf32>
    %cst_17 = arith.constant 0.000000e+00 : f32
    %22 = vector.broadcast %cst_17 : f32 to vector<2x128xf32>
    %cst_18 = arith.constant 0.000000e+00 : f32
    %23 = vector.broadcast %cst_18 : f32 to vector<2x128xf32>
    %c0_19 = arith.constant 0 : index
    %c0_20 = arith.constant 0 : index
    %c0_21 = arith.constant 0 : index
    %c0_22 = arith.constant 0 : index
    %24 = vector.load %arg3[%c0_19, %c0_20, %c0_21, %c0_22] : memref<1x4x2x128xf32, #tpu.memory_space<vmem>>, vector<1x1x2x128xf32>
    %25 = vector.shape_cast %24 : vector<1x1x2x128xf32> to vector<2x128xf32>
    %26 = arith.subf %25, %20 : vector<2x128xf32>
    %27 = math.exp %26 : vector<2x128xf32>
    %28 = arith.addf %21, %27 : vector<2x128xf32>
    %c0_i32_23 = arith.constant 0 : i32
    %29 = vector.broadcast %c0_i32_23 : i32 to vector<2x128xi32>
    %30 = arith.cmpi eq, %4, %29 : vector<2x128xi32>
    %31 = arith.select %30, %25, %22 : vector<2x128xi1>, vector<2x128xf32>
    %c0_24 = arith.constant 0 : index
    %c0_25 = arith.constant 0 : index
    %32 = vector.load %arg5[%c0_24, %c0_25] : memref<4x128xf32, #tpu.memory_space<vmem>>, vector<1x128xf32>
    %33 = vector.shape_cast %32 : vector<1x128xf32> to vector<128xf32>
    %34 = vector.shape_cast %33 : vector<128xf32> to vector<1x128xf32>
    %35 = vector.broadcast %34 : vector<1x128xf32> to vector<2x128xf32>
    %36 = arith.select %30, %35, %23 : vector<2x128xi1>, vector<2x128xf32>
    %c0_26 = arith.constant 0 : index
    %c1_27 = arith.constant 1 : index
    %c0_28 = arith.constant 0 : index
    %c0_29 = arith.constant 0 : index
    %37 = vector.load %arg3[%c0_26, %c1_27, %c0_28, %c0_29] : memref<1x4x2x128xf32, #tpu.memory_space<vmem>>, vector<1x1x2x128xf32>
    %38 = vector.shape_cast %37 : vector<1x1x2x128xf32> to vector<2x128xf32>
    %39 = arith.subf %38, %20 : vector<2x128xf32>
    %40 = math.exp %39 : vector<2x128xf32>
    %41 = arith.addf %28, %40 : vector<2x128xf32>
    %c1_i32 = arith.constant 1 : i32
    %42 = vector.broadcast %c1_i32 : i32 to vector<2x128xi32>
    %43 = arith.cmpi eq, %4, %42 : vector<2x128xi32>
    %44 = arith.select %43, %38, %31 : vector<2x128xi1>, vector<2x128xf32>
    %c1_30 = arith.constant 1 : index
    %c0_31 = arith.constant 0 : index
    %45 = vector.load %arg5[%c1_30, %c0_31] : memref<4x128xf32, #tpu.memory_space<vmem>>, vector<1x128xf32>
    %46 = vector.shape_cast %45 : vector<1x128xf32> to vector<128xf32>
    %47 = vector.shape_cast %46 : vector<128xf32> to vector<1x128xf32>
    %48 = vector.broadcast %47 : vector<1x128xf32> to vector<2x128xf32>
    %49 = arith.select %43, %48, %36 : vector<2x128xi1>, vector<2x128xf32>
    %c0_32 = arith.constant 0 : index
    %c2_33 = arith.constant 2 : index
    %c0_34 = arith.constant 0 : index
    %c0_35 = arith.constant 0 : index
    %50 = vector.load %arg3[%c0_32, %c2_33, %c0_34, %c0_35] : memref<1x4x2x128xf32, #tpu.memory_space<vmem>>, vector<1x1x2x128xf32>
    %51 = vector.shape_cast %50 : vector<1x1x2x128xf32> to vector<2x128xf32>
    %52 = arith.subf %51, %20 : vector<2x128xf32>
    %53 = math.exp %52 : vector<2x128xf32>
    %54 = arith.addf %41, %53 : vector<2x128xf32>
    %c2_i32 = arith.constant 2 : i32
    %55 = vector.broadcast %c2_i32 : i32 to vector<2x128xi32>
    %56 = arith.cmpi eq, %4, %55 : vector<2x128xi32>
    %57 = arith.select %56, %51, %44 : vector<2x128xi1>, vector<2x128xf32>
    %c2_36 = arith.constant 2 : index
    %c0_37 = arith.constant 0 : index
    %58 = vector.load %arg5[%c2_36, %c0_37] : memref<4x128xf32, #tpu.memory_space<vmem>>, vector<1x128xf32>
    %59 = vector.shape_cast %58 : vector<1x128xf32> to vector<128xf32>
    %60 = vector.shape_cast %59 : vector<128xf32> to vector<1x128xf32>
    %61 = vector.broadcast %60 : vector<1x128xf32> to vector<2x128xf32>
    %62 = arith.select %56, %61, %49 : vector<2x128xi1>, vector<2x128xf32>
    %c0_38 = arith.constant 0 : index
    %c3_39 = arith.constant 3 : index
    %c0_40 = arith.constant 0 : index
    %c0_41 = arith.constant 0 : index
    %63 = vector.load %arg3[%c0_38, %c3_39, %c0_40, %c0_41] : memref<1x4x2x128xf32, #tpu.memory_space<vmem>>, vector<1x1x2x128xf32>
    %64 = vector.shape_cast %63 : vector<1x1x2x128xf32> to vector<2x128xf32>
    %65 = arith.subf %64, %20 : vector<2x128xf32>
    %66 = math.exp %65 : vector<2x128xf32>
    %67 = arith.addf %54, %66 : vector<2x128xf32>
    %c3_i32 = arith.constant 3 : i32
    %68 = vector.broadcast %c3_i32 : i32 to vector<2x128xi32>
    %69 = arith.cmpi eq, %4, %68 : vector<2x128xi32>
    %70 = arith.select %69, %64, %57 : vector<2x128xi1>, vector<2x128xf32>
    %c3_42 = arith.constant 3 : index
    %c0_43 = arith.constant 0 : index
    %71 = vector.load %arg5[%c3_42, %c0_43] : memref<4x128xf32, #tpu.memory_space<vmem>>, vector<1x128xf32>
    %72 = vector.shape_cast %71 : vector<1x128xf32> to vector<128xf32>
    %73 = vector.shape_cast %72 : vector<128xf32> to vector<1x128xf32>
    %74 = vector.broadcast %73 : vector<1x128xf32> to vector<2x128xf32>
    %75 = arith.select %69, %74, %62 : vector<2x128xi1>, vector<2x128xf32>
    %76 = arith.subf %20, %70 : vector<2x128xf32>
    %77 = math.log %67 : vector<2x128xf32>
    %78 = arith.addf %76, %77 : vector<2x128xf32>
    %c0_44 = arith.constant 0 : index
    %c0_45 = arith.constant 0 : index
    %79 = vector.load %arg8[%c0_44, %c0_45] : memref<2x128xf32, #tpu.memory_space<vmem>>, vector<2x128xf32>
    %80 = arith.mulf %75, %78 : vector<2x128xf32>
    %cst_46 = arith.constant 0.000000e+00 : f32
    %81 = vector.broadcast %cst_46 : f32 to vector<2x128xf32>
    %82 = arith.select %9, %80, %81 : vector<2x128xi1>, vector<2x128xf32>
    %83 = arith.addf %79, %82 : vector<2x128xf32>
    %c0_47 = arith.constant 0 : index
    %c0_48 = arith.constant 0 : index
    %84 = vector.load %arg8[%c0_47, %c0_48] : memref<2x128xf32, #tpu.memory_space<vmem>>, vector<2x128xf32>
    tpu.vector_store %arg8[%c0_47, %c0_48], %83 {strides = array<i32>} : memref<2x128xf32, #tpu.memory_space<vmem>>, vector<2x128xf32>,
    %c0_49 = arith.constant 0 : index
    %c0_50 = arith.constant 0 : index
    %85 = vector.load %arg9[%c0_49, %c0_50] : memref<2x128xf32, #tpu.memory_space<vmem>>, vector<2x128xf32>
    %cst_51 = arith.constant 0.000000e+00 : f32
    %86 = vector.broadcast %cst_51 : f32 to vector<2x128xf32>
    %87 = arith.select %9, %75, %86 : vector<2x128xi1>, vector<2x128xf32>
    %88 = arith.addf %85, %87 : vector<2x128xf32>
    %c0_52 = arith.constant 0 : index
    %c0_53 = arith.constant 0 : index
    %89 = vector.load %arg9[%c0_52, %c0_53] : memref<2x128xf32, #tpu.memory_space<vmem>>, vector<2x128xf32>
    tpu.vector_store %arg9[%c0_52, %c0_53], %88 {strides = array<i32>} : memref<2x128xf32, #tpu.memory_space<vmem>>, vector<2x128xf32>,
    %c0_i32_54 = arith.constant 0 : i32
    %90 = arith.cmpi eq, %arg2, %c0_i32_54 : i32
    %91 = arith.extui %90 : i1 to i32
    %c0_i32_55 = arith.constant 0 : i32
    %92 = arith.cmpi ne, %91, %c0_i32_55 : i32
    scf.if %92 {
      %c0_56 = arith.constant 0 : index
      %c0_57 = arith.constant 0 : index
      %93 = vector.load %arg8[%c0_56, %c0_57] : memref<2x128xf32, #tpu.memory_space<vmem>>, vector<2x128xf32>
      %cst_58 = arith.constant dense<0.000000e+00> : vector<128xf32>
      %94 = vector.multi_reduction <add>, %93, %cst_58 [0] : vector<2x128xf32> to vector<128xf32>
      %95 = vector.shape_cast %94 : vector<128xf32> to vector<1x128xf32>
      %96 = vector.shape_cast %95 : vector<1x128xf32> to vector<1x1x1x128xf32>
      %c0_59 = arith.constant 0 : index
      %c0_60 = arith.constant 0 : index
      %c0_61 = arith.constant 0 : index
      %c0_62 = arith.constant 0 : index
      %97 = vector.load %arg6[%c0_59, %c0_60, %c0_61, %c0_62] : memref<1x1x1x128xf32, #tpu.memory_space<vmem>>, vector<1x1x1x128xf32>
      tpu.vector_store %arg6[%c0_59, %c0_60, %c0_61, %c0_62], %96 {strides = array<i32>} : memref<1x1x1x128xf32, #tpu.memory_space<vmem>>, vector<1x1x1x128xf32>,
      %c0_63 = arith.constant 0 : index
      %c0_64 = arith.constant 0 : index
      %98 = vector.load %arg9[%c0_63, %c0_64] : memref<2x128xf32, #tpu.memory_space<vmem>>, vector<2x128xf32>
      %cst_65 = arith.constant dense<0.000000e+00> : vector<128xf32>
      %99 = vector.multi_reduction <add>, %98, %cst_65 [0] : vector<2x128xf32> to vector<128xf32>
      %100 = vector.shape_cast %99 : vector<128xf32> to vector<1x128xf32>
      %101 = vector.shape_cast %100 : vector<1x128xf32> to vector<1x1x1x128xf32>
      %c0_66 = arith.constant 0 : index
      %c0_67 = arith.constant 0 : index
      %c0_68 = arith.constant 0 : index
      %c0_69 = arith.constant 0 : index
      %102 = vector.load %arg7[%c0_66, %c0_67, %c0_68, %c0_69] : memref<1x1x1x128xf32, #tpu.memory_space<vmem>>, vector<1x1x1x128xf32>
      tpu.vector_store %arg7[%c0_66, %c0_67, %c0_68, %c0_69], %101 {strides = array<i32>} : memref<1x1x1x128xf32, #tpu.memory_space<vmem>>, vector<1x1x1x128xf32>,
    } else {
    }
    return
  }
  func.func @transform_0(%arg0: i32, %arg1: i32, %arg2: i32) -> (i32, i32, i32, i32) {
    %c1_i32 = arith.constant 1 : i32
    %0 = arith.muli %arg1, %c1_i32 : i32
    %1 = arith.addi %0, %arg2 : i32
    %c0_i32 = arith.constant 0 : i32
    %c0_i32_0 = arith.constant 0 : i32
    %c0_i32_1 = arith.constant 0 : i32
    return %arg0, %c0_i32, %1, %c0_i32_0 : i32, i32, i32, i32
  }
  func.func @transform_1(%arg0: i32, %arg1: i32, %arg2: i32) -> (i32, i32, i32) {
    %c1_i32 = arith.constant 1 : i32
    %0 = arith.muli %arg1, %c1_i32 : i32
    %1 = arith.addi %0, %arg2 : i32
    %c0_i32 = arith.constant 0 : i32
    %c0_i32_0 = arith.constant 0 : i32
    return %arg0, %1, %c0_i32 : i32, i32, i32
  }
  func.func @transform_2(%arg0: i32, %arg1: i32, %arg2: i32) -> (i32, i32) {
    %c0_i32 = arith.constant 0 : i32
    %c0_i32_0 = arith.constant 0 : i32
    %c0_i32_1 = arith.constant 0 : i32
    return %c0_i32, %c0_i32_0 : i32, i32
  }
  func.func @transform_3(%arg0: i32, %arg1: i32, %arg2: i32) -> (i32, i32, i32, i32) {
    %c0_i32 = arith.constant 0 : i32
    %c0_i32_0 = arith.constant 0 : i32
    %c0_i32_1 = arith.constant 0 : i32
    return %arg0, %arg1, %c0_i32, %c0_i32_0 : i32, i32, i32, i32
  }
  func.func @transform_4(%arg0: i32, %arg1: i32, %arg2: i32) -> (i32, i32, i32, i32) {
    %c0_i32 = arith.constant 0 : i32
    %c0_i32_0 = arith.constant 0 : i32
    %c0_i32_1 = arith.constant 0 : i32
    return %arg0, %arg1, %c0_i32, %c0_i32_0 : i32, i32, i32, i32
  }
}

</mosaic_0001>

<llo_original>
// kernel: tpu_custom_call.1
$region0: #{tpu_custom_call.1}
  #allocation0 [shape = 'u32[]', space=smem, size = 0x4, offset = 0x4, fixed_abs, tag = 'smem constant byte address 0x4 - core index']
  #allocation1 [shape = 'u32[144,128]{1,0:T(1,128)}', space=vmem, size = 0x12000, scoped, tag = 'internal scratch']
  #allocation2 [shape = 'f32[2,128]{1,0:T(2,128)}', space=vmem, size = 0x400, scoped, tag = 'scratch operand']
  #allocation3 [shape = 'f32[2,128]{1,0:T(2,128)}', space=vmem, size = 0x400, scoped, tag = 'scratch operand']
  %s0 = inlined_call_operand.hbm [shape: f32[2,4,2,128], index: 0, kind: input, shape index: {}]
  %s1 = inlined_call_operand.hbm [shape: s32[2,2,128], index: 1, kind: input, shape index: {}]
  %s2 = inlined_call_operand.hbm [shape: f32[4,128], index: 2, kind: input, shape index: {}]
  %s3 = inlined_call_operand.hbm [shape: f32[2,1,1,128], index: 3, kind: output, shape index: {0}]
  %s4 = inlined_call_operand.hbm [shape: f32[2,1,1,128], index: 4, kind: output, shape index: {1}]
  %5 = xla_tuple %s3, %s4
  %s6 = sld [smem:[#allocation0]]
  $region73: #{tpu_custom_call.1} parent=0
    _
  %s8 = ssub.s32 1, %s6
  %s9 = scalar_select 0, %s8, %s6
  $region1: #{tpu_custom_call.1} parent=0
    #allocation4 [shape = 'u8[8192]{0}', space=vmem, size = 0x2000, scoped, tag = 'input window, operand 0']
    #allocation5 [shape = 's32[2]{0}', space=sflag, size = 0x8, scoped, tag = 'scoped memory for tpu_custom_call.1']
    #allocation6 [shape = 's32[2]{0}', space=sflag, size = 0x8, scoped, tag = 'scoped memory for tpu_custom_call.1']
    #allocation7 [shape = 'u8[2048]{0}', space=vmem, size = 0x800, scoped, tag = 'input window, operand 1']
    #allocation8 [shape = 's32[2]{0}', space=sflag, size = 0x8, scoped, tag = 'scoped memory for tpu_custom_call.1']
    #allocation9 [shape = 'u8[2048]{0}', space=vmem, size = 0x800, scoped, tag = 'input window, operand 2, single buffered']
    #allocation10 [shape = 'u8[1024]{0}', space=vmem, size = 0x400, scoped, tag = 'output window, operand 0']
    #allocation11 [shape = 'u8[1024]{0}', space=vmem, size = 0x400, scoped, tag = 'output window, operand 1']
    #allocation12 [shape = 's32[2]{0}', space=sflag, size = 0x8, scoped, tag = 'scoped memory for tpu_custom_call.1']
    %10 = vsyncpa [#allocation5], 0
    %s11 = scalar_lea.sflag [#allocation5], 1
    %12 = vsyncpa %s11, 0
    %13 = vsyncpa [#allocation8], 0
    %s14 = scalar_lea.sflag [#allocation8], 1
    %15 = vsyncpa %s14, 0
    %16 = vsyncpa [#allocation6], 0
    %s17 = scalar_lea.sflag [#allocation6], 1
    %18 = vsyncpa %s17, 0
    %19 = vsyncpa [#allocation12], 0
    %s20 = scalar_lea.sflag [#allocation12], 1
    %21 = vsyncpa %s20, 0
    loop: start=0, step=1, limit=4
    $region2: #{tpu_custom_call.1} parent=1 // loop_pre_header
      _
    $region3: #{tpu_custom_call.1} parent=1 // loop_header
      %s23 = sphi 0, %s27
      %p24 = scmp.ge.s32.totalorder %s23, 4
      %s30 = sphi 0, %s49
      %s31 = sphi 0, %s45
      %s32 = sphi 0, %s41
      %s33 = sphi 0, %s30
      %s34 = sphi 0, %s31
      %s35 = sphi 0, %s32
      %s36 = sphi 0, %s33
      %s37 = sphi 0, %s34
      %s38 = sphi 0, %s35
      %s56 = sphi 0, %s58
      %s59 = sphi 0, %s56
      %s60 = sphi 0, %s59
      %s76 = sphi 0, %s60
      %s86 = sphi 0, %s88
      %s89 = sphi 0, %s86
      %s90 = sphi 0, %s89
      %s106 = sphi 0, %s90
      %s110 = sphi 0, %s110
      %s112 = sphi 0, %s110
      %s113 = sphi 0, %s112
      %s127 = sphi 0, %s113
      %s135 = sphi 0, %s137
      %s138 = sphi 0, %s135
      %s139 = sphi 0, %s138
      %s155 = sphi 0, %s139
      %s163 = sphi 0, %s165
      %s166 = sphi 0, %s163
      %s167 = sphi 0, %s166
      %s183 = sphi 0, %s167
    $region4: #{tpu_custom_call.1} parent=1 // loop_header_branch
      %26 = sbr.rel (%p24) target = $region8
    $region5: #{tpu_custom_call.1} parent=1 // loop_body
      %s28 = ssub.s32 %s23, 1
      %s29 = ssub.s32 %s23, 2
      %s39 = sadd.s32 1, %s32
      %p40 = scmp.ge.s32.totalorder %s39, 1
      %s41 = scalar_select %p40, 0, %s39
      %s42 = sadd.s32 1, %s31
      %s43 = scalar_select %p40, %s42, %s31
      %p44 = scmp.ge.s32.totalorder %s43, 1
      %s45 = scalar_select %p44, 0, %s43
      %s46 = sadd.s32 1, %s30
      %s47 = scalar_select %p44, %s46, %s30
      %p48 = scmp.ge.s32.totalorder %s47, 2
      %s49 = scalar_select %p48, 0, %s47
      %s50 = sadd.s32 %s31, %s32
      %s51 = sadd.s32 %s45, %s41
      %s52 = ssub.s32 %s30, %s49
      %s53 = ssub.s32 %s50, %s51
      %s54 = sor.u32 %s52, %s53
      %p55 = scmp.eq.s32.totalorder %s54, 0
      %s57 = sadd.s32 %s56, 1
      %s58 = scalar_select %p55, %s56, %s57
      %p61 = pneg %p55
      %p62 = scmp.eq.s32.totalorder %s23, 1
      %p63 = por %p61, %p62
      %p64 = scmp.ne.s32.totalorder %s56, %s59
      %p65 = scmp.eq.s32.totalorder %s23, 0
      %p66 = por %p64, %p65
      %p67 = scmp.ne.s32.totalorder %s56, %s59
      %p68 = scmp.eq.s32.totalorder %s28, 1
      %p69 = por %p67, %p68
      %p70 = scmp.ne.s32.totalorder %s59, %s60
      %p71 = scmp.eq.s32.totalorder %s28, 0
      %p72 = por %p70, %p71
      %p73 = scmp.ne.s32.totalorder %s59, %s60
      %p74 = scmp.eq.s32.totalorder %s29, 1
      %p75 = por %p73, %p74
      %p77 = scmp.ne.s32.totalorder %s60, %s76
      %p78 = scmp.eq.s32.totalorder %s29, 0
      %p79 = por %p77, %p78
      %s80 = sadd.s32 %s31, %s32
      %s81 = sadd.s32 %s45, %s41
      %s82 = ssub.s32 %s30, %s49
      %s83 = ssub.s32 %s80, %s81
      %s84 = sor.u32 %s82, %s83
      %p85 = scmp.eq.s32.totalorder %s84, 0
      %s87 = sadd.s32 %s86, 1
      %s88 = scalar_select %p85, %s86, %s87
      %p91 = pneg %p85
      %p92 = scmp.eq.s32.totalorder %s23, 1
      %p93 = por %p91, %p92
      %p94 = scmp.ne.s32.totalorder %s86, %s89
      %p95 = scmp.eq.s32.totalorder %s23, 0
      %p96 = por %p94, %p95
      %p97 = scmp.ne.s32.totalorder %s86, %s89
      %p98 = scmp.eq.s32.totalorder %s28, 1
      %p99 = por %p97, %p98
      %p100 = scmp.ne.s32.totalorder %s89, %s90
      %p101 = scmp.eq.s32.totalorder %s28, 0
      %p102 = por %p100, %p101
      %p103 = scmp.ne.s32.totalorder %s89, %s90
      %p104 = scmp.eq.s32.totalorder %s29, 1
      %p105 = por %p103, %p104
      %p107 = scmp.ne.s32.totalorder %s90, %s106
      %p108 = scmp.eq.s32.totalorder %s29, 0
      %p109 = por %p107, %p108
      %s111 = sadd.s32 %s110, 1
      %p114 = scmp.eq.s32.totalorder %s23, 1
      %p115 = scmp.ne.s32.totalorder %s110, %s112
      %p116 = scmp.eq.s32.totalorder %s23, 0
      %p117 = por %p115, %p116
      %p118 = scmp.ne.s32.totalorder %s110, %s112
      %p119 = scmp.eq.s32.totalorder %s28, 1
      %p120 = por %p118, %p119
      %p121 = scmp.ne.s32.totalorder %s112, %s113
      %p122 = scmp.eq.s32.totalorder %s28, 0
      %p123 = por %p121, %p122
      %p124 = scmp.ne.s32.totalorder %s112, %s113
      %p125 = scmp.eq.s32.totalorder %s29, 1
      %p126 = por %p124, %p125
      %p128 = scmp.ne.s32.totalorder %s113, %s127
      %p129 = scmp.eq.s32.totalorder %s29, 0
      %p130 = por %p128, %p129
      %s131 = ssub.s32 %s30, %s49
      %s132 = ssub.s32 %s31, %s45
      %s133 = sor.u32 %s131, %s132
      %p134 = scmp.eq.s32.totalorder %s133, 0
      %s136 = sadd.s32 %s135, 1
      %s137 = scalar_select %p134, %s135, %s136
      %p140 = pneg %p134
      %p141 = scmp.eq.s32.totalorder %s23, 1
      %p142 = por %p140, %p141
      %p143 = scmp.ne.s32.totalorder %s135, %s138
      %p144 = scmp.eq.s32.totalorder %s23, 0
      %p145 = por %p143, %p144
      %p146 = scmp.ne.s32.totalorder %s135, %s138
      %p147 = scmp.eq.s32.totalorder %s28, 1
      %p148 = por %p146, %p147
      %p149 = scmp.ne.s32.totalorder %s138, %s139
      %p150 = scmp.eq.s32.totalorder %s28, 0
      %p151 = por %p149, %p150
      %p152 = scmp.ne.s32.totalorder %s138, %s139
      %p153 = scmp.eq.s32.totalorder %s29, 1
      %p154 = por %p152, %p153
      %p156 = scmp.ne.s32.totalorder %s139, %s155
      %p157 = scmp.eq.s32.totalorder %s29, 0
      %p158 = por %p156, %p157
      %s159 = ssub.s32 %s30, %s49
      %s160 = ssub.s32 %s31, %s45
      %s161 = sor.u32 %s159, %s160
      %p162 = scmp.eq.s32.totalorder %s161, 0
      %s164 = sadd.s32 %s163, 1
      %s165 = scalar_select %p162, %s163, %s164
      %p168 = pneg %p162
      %p169 = scmp.eq.s32.totalorder %s23, 1
      %p170 = por %p168, %p169
      %p171 = scmp.ne.s32.totalorder %s163, %s166
      %p172 = scmp.eq.s32.totalorder %s23, 0
      %p173 = por %p171, %p172
      %p174 = scmp.ne.s32.totalorder %s163, %s166
      %p175 = scmp.eq.s32.totalorder %s28, 1
      %p176 = por %p174, %p175
      %p177 = scmp.ne.s32.totalorder %s166, %s167
      %p178 = scmp.eq.s32.totalorder %s28, 0
      %p179 = por %p177, %p178
      %p180 = scmp.ne.s32.totalorder %s166, %s167
      %p181 = scmp.eq.s32.totalorder %s29, 1
      %p182 = por %p180, %p181
      %p184 = scmp.ne.s32.totalorder %s167, %s183
      %p185 = scmp.eq.s32.totalorder %s29, 0
      %p186 = por %p184, %p185
      %p187 = scmp.le.s32.totalorder 1, %s23
      %p188 = scmp.lt.s32.totalorder %s23, 3
      %p189 = pnand %p187, %p188
      %p190 = pneg %p189
      // Predicated region
      $region9: #{tpu_custom_call.1} parent=5 // pred_check
        _
      $region10: #{tpu_custom_call.1} parent=5 // pred_check_branch
        %192 = sbr.rel (%p189) target = $region12
      $region11: #{tpu_custom_call.1} parent=5 // pred_region
        %s193 = ssub.s32 %s23, 1
        // Predicated region
        $region13: #{tpu_custom_call.1} parent=11 // pred_check
          %p194 = pneg %p123
        $region14: #{tpu_custom_call.1} parent=11 // pred_check_branch
          %196 = sbr.rel (%p194) target = $region16
        $region15: #{tpu_custom_call.1} parent=11 // pred_region
          %s198 = ssub.s32 64, 64
          %199 = vsyncadd [#allocation8], %s198
          %s201 = sshll.u32 [#allocation9], 4
          %s202 = int_to_ptr.vmem [resolvable:$true] %s201
          %204 = dma.hbm_to_vmem [thread:$0]  %s2, 64, %s202, [#allocation8]
        $region16: #{tpu_custom_call.1} parent=11 // pred_fallthru
          _
      $region12: #{tpu_custom_call.1} parent=5 // pred_fallthru
        _
      %p205 = scmp.lt.s32.totalorder %s23, 2
      // Predicated region
      $region17: #{tpu_custom_call.1} parent=5 // pred_check
        %p206 = pneg %p205
      $region18: #{tpu_custom_call.1} parent=5 // pred_check_branch
        %208 = sbr.rel (%p206) target = $region20
      $region19: #{tpu_custom_call.1} parent=5 // pred_region
        // Predicated region
        $region21: #{tpu_custom_call.1} parent=19 // pred_check
          %p209 = pneg %p66
        $region22: #{tpu_custom_call.1} parent=19 // pred_check_branch
          %211 = sbr.rel (%p209) target = $region24
        $region23: #{tpu_custom_call.1} parent=19 // pred_region
          %s212 = sand.u32 %s56, 1
          %s213 = scalar_lea.sflag [#allocation5], %s212
          %s214 = sand.u32 %s56, 1
          %s215 = smul.addr %s214, 8
          %s216 = scalar_lea.vmem [#allocation4], %s215
          %s217 = sadd.s32 %s31, %s32
          %s219 = ssub.s32 128, 128
          %220 = vsyncadd %s213, %s219
          %s221 = smul.addr %s30, 4
          %s222 = sadd.s32 %s217, %s221
          %s223 = smul.addr %s222, 32
          %s224 = scalar_lea.hbm %s0, %s223
          %s225 = sshll.u32 %s216, 4
          %s226 = int_to_ptr.vmem [resolvable:$true] %s225
          %231 = dma.hbm_to_vmem [thread:$0]  %s224, 128, %s226, %s213, 32, 32, 2
        $region24: #{tpu_custom_call.1} parent=19 // pred_fallthru
          _
        // Predicated region
        $region25: #{tpu_custom_call.1} parent=19 // pred_check
          %p232 = pneg %p96
        $region26: #{tpu_custom_call.1} parent=19 // pred_check_branch
          %234 = sbr.rel (%p232) target = $region28
        $region27: #{tpu_custom_call.1} parent=19 // pred_region
          %s235 = sand.u32 %s23, 1
          %s236 = scalar_lea.sflag [#allocation8], %s235
          %s237 = sand.u32 %s86, 1
          %s238 = smul.addr %s237, 2
          %s239 = scalar_lea.vmem [#allocation7], %s238
          %s240 = sadd.s32 %s31, %s32
          %s242 = ssub.s32 32, 32
          %243 = vsyncadd %s236, %s242
          %s244 = sadd.s32 %s240, %s30
          %s245 = smul.addr %s244, 32
          %s246 = scalar_lea.hbm %s1, %s245
          %s248 = sshll.u32 %s239, 4
          %s249 = int_to_ptr.vmem [resolvable:$true] %s248
          %251 = dma.hbm_to_vmem [thread:$0]  %s246, 32, %s249, %s236
        $region28: #{tpu_custom_call.1} parent=19 // pred_fallthru
          _
      $region20: #{tpu_custom_call.1} parent=5 // pred_fallthru
        _
      %p252 = scmp.le.s32.totalorder 1, %s23
      %p253 = scmp.lt.s32.totalorder %s23, 3
      %p254 = pnand %p252, %p253
      %p255 = pneg %p254
      // Predicated region
      $region29: #{tpu_custom_call.1} parent=5 // pred_check
        _
      $region30: #{tpu_custom_call.1} parent=5 // pred_check_branch
        %257 = sbr.rel (%p254) target = $region32
      $region31: #{tpu_custom_call.1} parent=5 // pred_region
        %s258 = ssub.s32 %s23, 1
        %s259 = sand.u32 %s59, 1
        %s260 = scalar_lea.sflag [#allocation5], %s259
        %s261 = sand.u32 %s59, 1
        %s262 = smul.addr %s261, 8
        %s263 = scalar_lea.vmem [#allocation4], %s262
        // Predicated region
        $region33: #{tpu_custom_call.1} parent=31 // pred_check
          %p264 = pneg %p72
        $region34: #{tpu_custom_call.1} parent=31 // pred_check_branch
          %266 = sbr.rel (%p264) target = $region36
        $region35: #{tpu_custom_call.1} parent=31 // pred_region
          %267 = dma.done %s260, 128
        $region36: #{tpu_custom_call.1} parent=31 // pred_fallthru
          _
        %s268 = sand.u32 %s28, 1
        %s269 = scalar_lea.sflag [#allocation8], %s268
        %s270 = sand.u32 %s89, 1
        %s271 = smul.addr %s270, 2
        %s272 = scalar_lea.vmem [#allocation7], %s271
        // Predicated region
        $region37: #{tpu_custom_call.1} parent=31 // pred_check
          %p273 = pneg %p102
        $region38: #{tpu_custom_call.1} parent=31 // pred_check_branch
          %275 = sbr.rel (%p273) target = $region40
        $region39: #{tpu_custom_call.1} parent=31 // pred_region
          %276 = dma.done %s269, 32
        $region40: #{tpu_custom_call.1} parent=31 // pred_fallthru
          _
        // Predicated region
        $region41: #{tpu_custom_call.1} parent=31 // pred_check
          %p277 = pneg %p123
        $region42: #{tpu_custom_call.1} parent=31 // pred_check_branch
          %279 = sbr.rel (%p277) target = $region44
        $region43: #{tpu_custom_call.1} parent=31 // pred_region
          %280 = dma.done [#allocation8], 64
        $region44: #{tpu_custom_call.1} parent=31 // pred_fallthru
          _
        %s281 = sand.u32 %s59, 1
        %s282 = scalar_lea.sflag [#allocation5], %s281
        %s283 = sand.u32 %s59, 1
        %s284 = smul.addr %s283, 8
        %s285 = scalar_lea.vmem [#allocation4], %s284
        %p286 = pneg %p72
        %p287 = pneg %p69
        %s288 = sand.u32 %s28, 1
        %s289 = scalar_lea.sflag [#allocation8], %s288
        %s290 = sand.u32 %s89, 1
        %s291 = smul.addr %s290, 2
        %s292 = scalar_lea.vmem [#allocation7], %s291
        %p293 = pneg %p102
        %p294 = pneg %p99
        %p295 = pneg %p123
        %p296 = pneg %p120
        %p297 = pneg %p151
        %p298 = pneg %p148
        %s299 = sand.u32 %s138, 1
        %s300 = scalar_lea.sflag [#allocation6], %s299
        %s301 = sand.u32 %s138, 1
        %s302 = scalar_lea.vmem [#allocation10], %s301
        %p303 = pneg %p179
        %p304 = pneg %p176
        %s305 = sand.u32 %s166, 1
        %s306 = scalar_lea.sflag [#allocation12], %s305
        %s307 = sand.u32 %s166, 1
        %s308 = scalar_lea.vmem [#allocation11], %s307
        %s309 = sadd.s32 %s34, %s35
        %s310 = sadd.s32 %s34, %s35
        %p311 = scmp.eq.s32.totalorder %s35, 0
        // Predicated region
        $region45: #{tpu_custom_call.1} parent=31 // pred_check
          %p312 = pneg %p311
        $region46: #{tpu_custom_call.1} parent=31 // pred_check_branch
          %314 = sbr.rel (%p312) target = $region48
        $region47: #{tpu_custom_call.1} parent=31 // pred_region
          %315 = vst [vmem:[#allocation2] sm:$0x3] 0.0
          %316 = vst [vmem:[#allocation3] sm:$0x3] 0.0
        $region48: #{tpu_custom_call.1} parent=31 // pred_fallthru
          _
        %v317 = vld [vmem:[%s272] sm:$0x3]
        %vm318 = vcmp.ge.s32.totalorder %v317, 0
        %vm319 = vcmp.ne.s32.totalorder %v317, 255
        %vm320 = vmand %vm318, %vm319
        %v321 = vld [vmem:[%s263] sm:$0x3]
        %s322 = scalar_lea.vmem %s263, 2 [#allocation4]
        %v323 = vld [vmem:[%s322] sm:$0x3]
        %v324 = vmax.f32 %v321, %v323
        %s325 = scalar_lea.vmem %s263, 4 [#allocation4]
        %v326 = vld [vmem:[%s325] sm:$0x3]
        %v327 = vmax.f32 %v324, %v326
        %s328 = scalar_lea.vmem %s263, 6 [#allocation4]
        %v329 = vld [vmem:[%s328] sm:$0x3]
        %v330 = vmax.f32 %v327, %v329
        %v331 = vsub.f32 %v321, %v330
        %v332 = vmul.f32 %v331, 1.442695
        %v333 = vpow.pop %v332
        %v334 = vadd.f32 %v333, 0.0
        %vm335 = vcmp.eq.s32.totalorder %v317, 0
        %v336 = vsel %vm335, %v321, 0.0
        %v337 = vld [vmem:[#allocation9] sm:$0x1]
        %v338 = vlaneseq
        %v339 = vshrl.u32 %v338, 7
        %v340 = vsub.s32 0, %v339
        %v341 = vrot.slane %v337, %v340
        %v342 = vsel %vm335, %v341, 0.0
        %v343 = vsub.f32 %v323, %v330
        %v344 = vmul.f32 %v343, 1.442695
        %v345 = vpow.pop %v344
        %v346 = vadd.f32 %v334, %v345
        %vm347 = vcmp.eq.s32.totalorder %v317, 1
        %v348 = vsel %vm347, %v323, %v336
        %v349 = vld [vmem:[#allocation9 + $0x1] sm:$0x1]
        %v350 = vlaneseq
        %v351 = vshrl.u32 %v350, 7
        %v352 = vsub.s32 0, %v351
        %v353 = vrot.slane %v349, %v352
        %v354 = vsel %vm347, %v353, %v342
        %v355 = vsub.f32 %v326, %v330
        %v356 = vmul.f32 %v355, 1.442695
        %v357 = vpow.pop %v356
        %v358 = vadd.f32 %v346, %v357
        %vm359 = vcmp.eq.s32.totalorder %v317, 2
        %v360 = vsel %vm359, %v326, %v348
        %v361 = vld [vmem:[#allocation9 + $0x2] sm:$0x1]
        %v362 = vlaneseq
        %v363 = vshrl.u32 %v362, 7
        %v364 = vsub.s32 0, %v363
        %v365 = vrot.slane %v361, %v364
        %v366 = vsel %vm359, %v365, %v354
        %v367 = vsub.f32 %v329, %v330
        %v368 = vmul.f32 %v367, 1.442695
        %v369 = vpow.pop %v368
        %v370 = vadd.f32 %v358, %v369
        %vm371 = vcmp.eq.s32.totalorder %v317, 3
        %v372 = vsel %vm371, %v329, %v360
        %v373 = vld [vmem:[#allocation9 + $0x3] sm:$0x1]
        %v374 = vlaneseq
        %v375 = vshrl.u32 %v374, 7
        %v376 = vsub.s32 0, %v375
        %v377 = vrot.slane %v373, %v376
        %v378 = vsel %vm371, %v377, %v366
        %v379 = vsub.f32 %v330, %v372
        %v380 = vlog2.pop %v370
        %v381 = vmul.f32 %v380, 0.6931472
        %v382 = vadd.f32 %v379, %v381
        %v383 = vld [vmem:[#allocation2] sm:$0x3]
        %v384 = vmul.f32 %v378, %v382
        %v385 = vsel %vm320, %v384, 0.0
        %v386 = vadd.f32 %v383, %v385
        %387 = vst [vmem:[#allocation2] sm:$0x3] %v386
        %v388 = vld [vmem:[#allocation3] sm:$0x3]
        %v389 = vsel %vm320, %v378, 0.0
        %v390 = vadd.f32 %v388, %v389
        %391 = vst [vmem:[#allocation3] sm:$0x3] %v390
        // Predicated region
        $region49: #{tpu_custom_call.1} parent=31 // pred_check
          %p392 = pneg %p311
        $region50: #{tpu_custom_call.1} parent=31 // pred_check_branch
          %394 = sbr.rel (%p392) target = $region52
        $region51: #{tpu_custom_call.1} parent=31 // pred_region
          %v395 = vld [vmem:[#allocation2] sm:$0x3]
          %vm396 = vcmask 1041408
          %v397 = vsel %vm396, %v395, 0.0
          %v398 = vrot.slane %v397, 4
          %v399 = vadd.f32 %v397, %v398
          %v400 = vrot.slane %v399, 2
          %v401 = vadd.f32 %v399, %v400
          %v402 = vrot.slane %v401, 1
          %v403 = vadd.f32 %v401, %v402
          %404 = vst [vmem:[%s302] sm:$0x1] %v403
          %v405 = vld [vmem:[#allocation3] sm:$0x3]
          %v406 = vsel %vm396, %v405, 0.0
          %v407 = vrot.slane %v406, 4
          %v408 = vadd.f32 %v406, %v407
          %v409 = vrot.slane %v408, 2
          %v410 = vadd.f32 %v408, %v409
          %v411 = vrot.slane %v410, 1
          %v412 = vadd.f32 %v410, %v411
          %413 = vst [vmem:[%s308] sm:$0x1] %v412
        $region52: #{tpu_custom_call.1} parent=31 // pred_fallthru
          _
        %s414 = sand.u32 %s138, 1
        %s415 = scalar_lea.sflag [#allocation6], %s414
        %s416 = sand.u32 %s138, 1
        %s417 = scalar_lea.vmem [#allocation10], %s416
        %s418 = sand.u32 %s166, 1
        %s419 = scalar_lea.sflag [#allocation12], %s418
        %s420 = sand.u32 %s166, 1
        %s421 = scalar_lea.vmem [#allocation11], %s420
        // Predicated region
        $region53: #{tpu_custom_call.1} parent=31 // pred_check
          %p422 = pneg %p148
        $region54: #{tpu_custom_call.1} parent=31 // pred_check_branch
          %424 = sbr.rel (%p422) target = $region56
        $region55: #{tpu_custom_call.1} parent=31 // pred_region
          %s426 = ssub.s32 16, 16
          %427 = vsyncadd %s415, %s426
          %s428 = sadd.s32 %s34, %s33
          %s429 = smul.addr %s428, 16
          %s430 = scalar_lea.hbm %s3, %s429
          %s432 = sshll.u32 %s417, 4
          %s433 = int_to_ptr.vmem [resolvable:$true] %s432
          %435 = dma.vmem_to_hbm [thread:$0]  %s433, 16, %s430, %s415
        $region56: #{tpu_custom_call.1} parent=31 // pred_fallthru
          _
        // Predicated region
        $region57: #{tpu_custom_call.1} parent=31 // pred_check
          %p436 = pneg %p176
        $region58: #{tpu_custom_call.1} parent=31 // pred_check_branch
          %438 = sbr.rel (%p436) target = $region60
        $region59: #{tpu_custom_call.1} parent=31 // pred_region
          %s440 = ssub.s32 16, 16
          %441 = vsyncadd %s419, %s440
          %s442 = sadd.s32 %s34, %s33
          %s443 = smul.addr %s442, 16
          %s444 = scalar_lea.hbm %s4, %s443
          %s446 = sshll.u32 %s421, 4
          %s447 = int_to_ptr.vmem [resolvable:$true] %s446
          %449 = dma.vmem_to_hbm [thread:$0]  %s447, 16, %s444, %s419
        $region60: #{tpu_custom_call.1} parent=31 // pred_fallthru
          _
      $region32: #{tpu_custom_call.1} parent=5 // pred_fallthru
        _
      %p450 = scmp.le.s32.totalorder 2, %s23
      // Predicated region
      $region61: #{tpu_custom_call.1} parent=5 // pred_check
        %p451 = pneg %p450
      $region62: #{tpu_custom_call.1} parent=5 // pred_check_branch
        %453 = sbr.rel (%p451) target = $region64
      $region63: #{tpu_custom_call.1} parent=5 // pred_region
        %s454 = ssub.s32 %s23, 2
        // Predicated region
        $region65: #{tpu_custom_call.1} parent=63 // pred_check
          %p455 = pneg %p154
        $region66: #{tpu_custom_call.1} parent=63 // pred_check_branch
          %457 = sbr.rel (%p455) target = $region68
        $region67: #{tpu_custom_call.1} parent=63 // pred_region
          %s458 = sand.u32 %s139, 1
          %s459 = scalar_lea.sflag [#allocation6], %s458
          %s460 = sand.u32 %s139, 1
          %s461 = scalar_lea.vmem [#allocation10], %s460
          %462 = dma.done %s459, 16
        $region68: #{tpu_custom_call.1} parent=63 // pred_fallthru
          _
        // Predicated region
        $region69: #{tpu_custom_call.1} parent=63 // pred_check
          %p463 = pneg %p182
        $region70: #{tpu_custom_call.1} parent=63 // pred_check_branch
          %465 = sbr.rel (%p463) target = $region72
        $region71: #{tpu_custom_call.1} parent=63 // pred_region
          %s466 = sand.u32 %s167, 1
          %s467 = scalar_lea.sflag [#allocation12], %s466
          %s468 = sand.u32 %s167, 1
          %s469 = scalar_lea.vmem [#allocation11], %s468
          %470 = dma.done %s467, 16
        $region72: #{tpu_custom_call.1} parent=63 // pred_fallthru
          _
      $region64: #{tpu_custom_call.1} parent=5 // pred_fallthru
        _
    $region6: #{tpu_custom_call.1} parent=1 // loop_footer
      %s27 = sadd.s32 1, %s23
    $region7: #{tpu_custom_call.1} parent=1 // loop_footer_branch
      %22 = sbr.rel target = $region3
    $region8: #{tpu_custom_call.1} parent=1 // loop_exit
      _
    %471 = vsyncpa [#allocation5], 1
    %s472 = scalar_lea.sflag [#allocation5], 1
    %473 = vsyncpa %s472, 1
    %474 = vsyncpa [#allocation8], 1
    %s475 = scalar_lea.sflag [#allocation8], 1
    %476 = vsyncpa %s475, 1
    %477 = vsyncpa [#allocation6], 1
    %s478 = scalar_lea.sflag [#allocation6], 1
    %479 = vsyncpa %s478, 1
    %480 = vsyncpa [#allocation12], 1
    %s481 = scalar_lea.sflag [#allocation12], 1
    %482 = vsyncpa %s481, 1

</llo_original>
